<compile_context>
chip_gen: v5e
topology: v5e:2x2
jax: 0.10.0
libtpu: 0.0.40
codegen_flags: <defaults>
</compile_context>

<pallas_src>
import jax
import jax.numpy as jnp
from jax.experimental import pallas as pl
from jax.experimental.pallas import tpu as pltpu


# ----------------------------- Pallas kernel --------------------------------
def spectron_kernel(tok_ref, emb_ref,
                    wpre_ref, bpre_ref,
                    qf_ref, kf_ref,
                    wv_ref, bv_ref,
                    wo_ref, bo_ref,
                    decay_ref,
                    wout_ref, bout_ref,
                    o_ref):
    T = o_ref.shape[0]
    V = emb_ref.shape[0]

    # ---- embedding lookup as one-hot matmul (no data-dependent gather) ----
    tok = tok_ref[...]                                              # (1, T) int32
    iota_v = jax.lax.broadcasted_iota(jnp.int32, (V, T), 0)
    onehot = (iota_v == tok).astype(jnp.float32)                    # (V, T)
    x_emb = jax.lax.dot_general(
        onehot, emb_ref[...],
        dimension_numbers=(((0,), (0,)), ((), ())),
        preferred_element_type=jnp.float32)                         # (T, D)

    # ---- pre_proj (Linear d_model -> seq_len) ----
    x_proj = jnp.dot(x_emb, wpre_ref[...],
                     preferred_element_type=jnp.float32) + bpre_ref[...]    # (T, T)

    # ---- spectral Q / K and value projection ----
    q = jnp.dot(x_proj, qf_ref[...], preferred_element_type=jnp.float32)    # (T, K)
    k = jnp.dot(x_proj, kf_ref[...], preferred_element_type=jnp.float32)    # (T, K)
    v = jnp.dot(x_emb, wv_ref[...],
                preferred_element_type=jnp.float32) + bv_ref[...]           # (T, K)

    # ---- causal decayed linear attention, reformulated as two matmuls ----
    # Y[t,:] = sum_{s<=t} decay[s] * (Q_t . V_s) * K[s,:]
    a = jax.lax.dot_general(
        q, v, dimension_numbers=(((1,), (1,)), ((), ())),
        preferred_element_type=jnp.float32)                         # (T, T)  A[t,s]=Q_t.V_s
    row = jax.lax.broadcasted_iota(jnp.int32, (T, T), 0)
    col = jax.lax.broadcasted_iota(jnp.int32, (T, T), 1)
    a = jnp.where(col <= row, a, 0.0)                               # causal (s <= t)

    k_scaled = k * decay_ref[...]                                   # (T,K) * (T,1)
    y = jnp.dot(a, k_scaled, preferred_element_type=jnp.float32)    # (T, K)

    # ---- o_proj, residual, out_proj ----
    attn = jnp.dot(y, wo_ref[...],
                   preferred_element_type=jnp.float32) + bo_ref[...]        # (T, D)
    out = x_emb + attn
    o_ref[...] = jnp.dot(out, wout_ref[...],
                         preferred_element_type=jnp.float32) + bout_ref[...]  # (T, d_out)


_WEIGHT_ORDER = ['emb', 'wpre', 'bpre', 'qf', 'kf', 'wv', 'bv',
                 'wo', 'bo', 'decay', 'wout', 'bout']


def spectron_pallas(tokens, params):
    B, T = tokens.shape
    d_out = params['wout'].shape[1]

    tok3 = tokens.reshape(B, 1, T).astype(jnp.int32)

    in_specs = [pl.BlockSpec((None, 1, T), lambda b: (b, 0, 0))]
    args = [tok3]
    for name in _WEIGHT_ORDER:
        w = params[name]
        in_specs.append(pl.BlockSpec(w.shape, lambda b: (0, 0)))
        args.append(w)

    return pl.pallas_call(
        spectron_kernel,
        out_shape=jax.ShapeDtypeStruct((B, T, d_out), jnp.float32),
        grid=(B,),
        in_specs=in_specs,
        out_specs=pl.BlockSpec((None, T, d_out), lambda b: (b, 0, 0)),
        compiler_params=pltpu.CompilerParams(
            dimension_semantics=("parallel",)),
    )(*args)


# -------------------- parameter construction (deterministic) ----------------
def get_hankel(seq_len):
    entries = jnp.arange(1, seq_len + 1, dtype=jnp.float32)
    i_plus_j = entries[:, None] + entries[None, :]
    return 2.0 / (i_plus_j ** 3 - i_plus_j)


def get_spectral_filters(seq_len, K):
    Z = get_hankel(seq_len)
    sigma, phi = jnp.linalg.eigh(Z)
    sigma_k = jnp.maximum(sigma[-K:], 1e-9)
    phi_k = phi[:, -K:] * sigma_k ** 0.25
    return phi_k.astype(jnp.float32)


def init_params(key, seq_len, d_model, k, vocab_size, d_out):
    num_emb = vocab_size + 3
    key, *ks = jax.random.split(key, 9)
    w = lambda kk, shape: jax.random.normal(kk, shape, jnp.float32) * 0.05

    if d_model != seq_len:
        wpre = w(ks[1], (d_model, seq_len))
        bpre = w(ks[2], (1, seq_len))
    else:  # nn.Identity()
        wpre = jnp.eye(d_model, dtype=jnp.float32)
        bpre = jnp.zeros((1, seq_len), jnp.float32)

    params = {
        'emb': w(ks[0], (num_emb, d_model)),
        'wpre': wpre,
        'bpre': bpre,
        'qf': get_spectral_filters(seq_len, k),
        'kf': get_spectral_filters(seq_len, k),
        'wv': w(ks[3], (d_model, k)),
        'bv': w(ks[4], (1, k)),
        'wo': w(ks[5], (k, d_model)),
        'bo': w(ks[6], (1, d_model)),
        # module inits decay to ones; perturb so the decay path is exercised
        'decay': 1.0 + 0.1 * jax.random.normal(ks[7], (seq_len, 1), jnp.float32),
        'wout': w(key, (d_model, d_out)),
        'bout': jnp.zeros((1, d_out), jnp.float32),
    }
    return params


# ---------------- pure-JAX reference (original cumsum formulation) ----------
def spectron_ref(tokens, params):
    x_emb = params['emb'][tokens]                                   # (B, T, D)
    xp = x_emb @ params['wpre'] + params['bpre'][0]
    Q = xp @ params['qf']
    K = xp @ params['kf']
    V = x_emb @ params['wv'] + params['bv'][0]
    Z = jnp.einsum('btp,btn->btpn', V, K)
    Z = Z * params['decay'][:, 0][None, :, None, None]
    H = jnp.cumsum(Z, axis=1)
    Y = jnp.einsum('btk,btkn->btn', Q, H)
    attn = Y @ params['wo'] + params['bo'][0]
    out = x_emb + attn
    return out @ params['wout'] + params['bout'][0]


if __name__ == "__main__":
    B, seq_len, d_model, k = 2, 16, 32, 8
    vocab_size, d_out = 8, 16

    key = jax.random.PRNGKey(0)
    k_tok, k_par = jax.random.split(key)
    tokens = jax.random.randint(k_tok, (B, seq_len), 0, vocab_size + 3)
    params = init_params(k_par, seq_len, d_model, k, vocab_size, d_out)

    out = spectron_pallas(tokens, params)
    out = jax.block_until_ready(out)

    ref = spectron_ref(tokens, params)
    assert out.shape == (B, seq_len, d_out)
    assert jnp.allclose(out, ref, atol=1e-4, rtol=1e-4), "mismatch vs reference"

    print("KERNEL_OK")
</pallas_src>

<mosaic_0001>
module attributes {stable_mosaic.version = 11 : i64} {
  func.func @spectron_kernel(%arg0: i32, %arg1: memref<1x1x16xi32, #tpu.memory_space<vmem>>, %arg2: memref<11x32xf32, #tpu.memory_space<vmem>>, %arg3: memref<32x16xf32, #tpu.memory_space<vmem>>, %arg4: memref<1x16xf32, #tpu.memory_space<vmem>>, %arg5: memref<16x8xf32, #tpu.memory_space<vmem>>, %arg6: memref<16x8xf32, #tpu.memory_space<vmem>>, %arg7: memref<32x8xf32, #tpu.memory_space<vmem>>, %arg8: memref<1x8xf32, #tpu.memory_space<vmem>>, %arg9: memref<8x32xf32, #tpu.memory_space<vmem>>, %arg10: memref<1x32xf32, #tpu.memory_space<vmem>>, %arg11: memref<16x1xf32, #tpu.memory_space<vmem>>, %arg12: memref<32x16xf32, #tpu.memory_space<vmem>>, %arg13: memref<1x16xf32, #tpu.memory_space<vmem>>, %arg14: memref<1x16x16xf32, #tpu.memory_space<vmem>>) attributes {dimension_semantics = [#tpu.dimension_semantics<parallel>], iteration_bounds = array<i64: 2>, scalar_prefetch = 0 : i64, scratch_operands = 0 : i64, tpu.core_type = #tpu.core_type<tc>, window_params = [{transform_indices = @transform_0, window_bounds = array<i64: 1, 1, 16>}, {pipeline_mode = #tpu.pipeline_mode<synchronous>, transform_indices = @transform_1, window_bounds = array<i64: 11, 32>}, {pipeline_mode = #tpu.pipeline_mode<synchronous>, transform_indices = @transform_2, window_bounds = array<i64: 32, 16>}, {pipeline_mode = #tpu.pipeline_mode<synchronous>, transform_indices = @transform_3, window_bounds = array<i64: 1, 16>}, {pipeline_mode = #tpu.pipeline_mode<synchronous>, transform_indices = @transform_4, window_bounds = array<i64: 16, 8>}, {pipeline_mode = #tpu.pipeline_mode<synchronous>, transform_indices = @transform_5, window_bounds = array<i64: 16, 8>}, {pipeline_mode = #tpu.pipeline_mode<synchronous>, transform_indices = @transform_6, window_bounds = array<i64: 32, 8>}, {pipeline_mode = #tpu.pipeline_mode<synchronous>, transform_indices = @transform_7, window_bounds = array<i64: 1, 8>}, {pipeline_mode = #tpu.pipeline_mode<synchronous>, transform_indices = @transform_8, window_bounds = array<i64: 8, 32>}, {pipeline_mode = #tpu.pipeline_mode<synchronous>, transform_indices = @transform_9, window_bounds = array<i64: 1, 32>}, {pipeline_mode = #tpu.pipeline_mode<synchronous>, transform_indices = @transform_10, window_bounds = array<i64: 16, 1>}, {pipeline_mode = #tpu.pipeline_mode<synchronous>, transform_indices = @transform_11, window_bounds = array<i64: 32, 16>}, {pipeline_mode = #tpu.pipeline_mode<synchronous>, transform_indices = @transform_12, window_bounds = array<i64: 1, 16>}, {transform_indices = @transform_13, window_bounds = array<i64: 1, 16, 16>}]} {
    %c0 = arith.constant 0 : index
    %c0_0 = arith.constant 0 : index
    %c0_1 = arith.constant 0 : index
    %0 = vector.load %arg1[%c0, %c0_0, %c0_1] : memref<1x1x16xi32, #tpu.memory_space<vmem>>, vector<1x1x16xi32>
    %1 = vector.shape_cast %0 : vector<1x1x16xi32> to vector<1x16xi32>
    %2 = tpu.iota {dimensions = array<i32: 0>} : vector<11x16xi32>
    %3 = vector.broadcast %1 : vector<1x16xi32> to vector<11x16xi32>
    %4 = arith.cmpi eq, %2, %3 : vector<11x16xi32>
    %5 = arith.extui %4 : vector<11x16xi1> to vector<11x16xi32>
    %6 = arith.sitofp %5 : vector<11x16xi32> to vector<11x16xf32>
    %c0_2 = arith.constant 0 : index
    %c0_3 = arith.constant 0 : index
    %7 = vector.load %arg2[%c0_2, %c0_3] : memref<11x32xf32, #tpu.memory_space<vmem>>, vector<11x32xf32>
    %cst = arith.constant dense<0.000000e+00> : vector<16x32xf32>
    %8 = tpu.matmul %6, %7, %cst {dimension_numbers = #tpu.dot_dimension_numbers<[0], [0], [1], [1], [0, 1, 1, 1], [], []>} : vector<11x16xf32>, vector<11x32xf32>, vector<16x32xf32> -> vector<16x32xf32>
    %c0_4 = arith.constant 0 : index
    %c0_5 = arith.constant 0 : index
    %9 = vector.load %arg3[%c0_4, %c0_5] : memref<32x16xf32, #tpu.memory_space<vmem>>, vector<32x16xf32>
    %cst_6 = arith.constant dense<0.000000e+00> : vector<16x16xf32>
    %10 = tpu.matmul %8, %9, %cst_6 {dimension_numbers = #tpu.dot_dimension_numbers<[1], [0], [0], [1], [0, 0, 1, 1], [], []>} : vector<16x32xf32>, vector<32x16xf32>, vector<16x16xf32> -> vector<16x16xf32>
    %c0_7 = arith.constant 0 : index
    %c0_8 = arith.constant 0 : index
    %11 = vector.load %arg4[%c0_7, %c0_8] : memref<1x16xf32, #tpu.memory_space<vmem>>, vector<1x16xf32>
    %12 = vector.broadcast %11 : vector<1x16xf32> to vector<16x16xf32>
    %13 = arith.addf %10, %12 : vector<16x16xf32>
    %c0_9 = arith.constant 0 : index
    %c0_10 = arith.constant 0 : index
    %14 = vector.load %arg5[%c0_9, %c0_10] : memref<16x8xf32, #tpu.memory_space<vmem>>, vector<16x8xf32>
    %cst_11 = arith.constant dense<0.000000e+00> : vector<16x8xf32>
    %15 = tpu.matmul %13, %14, %cst_11 {dimension_numbers = #tpu.dot_dimension_numbers<[1], [0], [0], [1], [0, 0, 1, 1], [], []>} : vector<16x16xf32>, vector<16x8xf32>, vector<16x8xf32> -> vector<16x8xf32>
    %c0_12 = arith.constant 0 : index
    %c0_13 = arith.constant 0 : index
    %16 = vector.load %arg6[%c0_12, %c0_13] : memref<16x8xf32, #tpu.memory_space<vmem>>, vector<16x8xf32>
    %cst_14 = arith.constant dense<0.000000e+00> : vector<16x8xf32>
    %17 = tpu.matmul %13, %16, %cst_14 {dimension_numbers = #tpu.dot_dimension_numbers<[1], [0], [0], [1], [0, 0, 1, 1], [], []>} : vector<16x16xf32>, vector<16x8xf32>, vector<16x8xf32> -> vector<16x8xf32>
    %c0_15 = arith.constant 0 : index
    %c0_16 = arith.constant 0 : index
    %18 = vector.load %arg7[%c0_15, %c0_16] : memref<32x8xf32, #tpu.memory_space<vmem>>, vector<32x8xf32>
    %cst_17 = arith.constant dense<0.000000e+00> : vector<16x8xf32>
    %19 = tpu.matmul %8, %18, %cst_17 {dimension_numbers = #tpu.dot_dimension_numbers<[1], [0], [0], [1], [0, 0, 1, 1], [], []>} : vector<16x32xf32>, vector<32x8xf32>, vector<16x8xf32> -> vector<16x8xf32>
    %c0_18 = arith.constant 0 : index
    %c0_19 = arith.constant 0 : index
    %20 = vector.load %arg8[%c0_18, %c0_19] : memref<1x8xf32, #tpu.memory_space<vmem>>, vector<1x8xf32>
    %21 = vector.broadcast %20 : vector<1x8xf32> to vector<16x8xf32>
    %22 = arith.addf %19, %21 : vector<16x8xf32>
    %cst_20 = arith.constant dense<0.000000e+00> : vector<16x16xf32>
    %23 = tpu.matmul %15, %22, %cst_20 {dimension_numbers = #tpu.dot_dimension_numbers<[1], [1], [0], [0], [0, 0, 1, 0], [], []>} : vector<16x8xf32>, vector<16x8xf32>, vector<16x16xf32> -> vector<16x16xf32>
    %24 = tpu.iota {dimensions = array<i32: 0>} : vector<16x16xi32>
    %25 = tpu.iota {dimensions = array<i32: 1>} : vector<16x16xi32>
    %26 = arith.cmpi sle, %25, %24 : vector<16x16xi32>
    %cst_21 = arith.constant 0.000000e+00 : f32
    %27 = vector.broadcast %cst_21 : f32 to vector<16x16xf32>
    %28 = arith.select %26, %23, %27 : vector<16x16xi1>, vector<16x16xf32>
    %c0_22 = arith.constant 0 : index
    %c0_23 = arith.constant 0 : index
    %29 = vector.load %arg11[%c0_22, %c0_23] : memref<16x1xf32, #tpu.memory_space<vmem>>, vector<16x1xf32>
    %30 = vector.broadcast %29 : vector<16x1xf32> to vector<16x8xf32>
    %31 = arith.mulf %17, %30 : vector<16x8xf32>
    %cst_24 = arith.constant dense<0.000000e+00> : vector<16x8xf32>
    %32 = tpu.matmul %28, %31, %cst_24 {dimension_numbers = #tpu.dot_dimension_numbers<[1], [0], [0], [1], [0, 0, 1, 1], [], []>} : vector<16x16xf32>, vector<16x8xf32>, vector<16x8xf32> -> vector<16x8xf32>
    %c0_25 = arith.constant 0 : index
    %c0_26 = arith.constant 0 : index
    %33 = vector.load %arg9[%c0_25, %c0_26] : memref<8x32xf32, #tpu.memory_space<vmem>>, vector<8x32xf32>
    %cst_27 = arith.constant dense<0.000000e+00> : vector<16x32xf32>
    %34 = tpu.matmul %32, %33, %cst_27 {dimension_numbers = #tpu.dot_dimension_numbers<[1], [0], [0], [1], [0, 0, 1, 1], [], []>} : vector<16x8xf32>, vector<8x32xf32>, vector<16x32xf32> -> vector<16x32xf32>
    %c0_28 = arith.constant 0 : index
    %c0_29 = arith.constant 0 : index
    %35 = vector.load %arg10[%c0_28, %c0_29] : memref<1x32xf32, #tpu.memory_space<vmem>>, vector<1x32xf32>
    %36 = vector.broadcast %35 : vector<1x32xf32> to vector<16x32xf32>
    %37 = arith.addf %34, %36 : vector<16x32xf32>
    %38 = arith.addf %8, %37 : vector<16x32xf32>
    %c0_30 = arith.constant 0 : index
    %c0_31 = arith.constant 0 : index
    %39 = vector.load %arg12[%c0_30, %c0_31] : memref<32x16xf32, #tpu.memory_space<vmem>>, vector<32x16xf32>
    %cst_32 = arith.constant dense<0.000000e+00> : vector<16x16xf32>
    %40 = tpu.matmul %38, %39, %cst_32 {dimension_numbers = #tpu.dot_dimension_numbers<[1], [0], [0], [1], [0, 0, 1, 1], [], []>} : vector<16x32xf32>, vector<32x16xf32>, vector<16x16xf32> -> vector<16x16xf32>
    %c0_33 = arith.constant 0 : index
    %c0_34 = arith.constant 0 : index
    %41 = vector.load %arg13[%c0_33, %c0_34] : memref<1x16xf32, #tpu.memory_space<vmem>>, vector<1x16xf32>
    %42 = vector.broadcast %41 : vector<1x16xf32> to vector<16x16xf32>
    %43 = arith.addf %40, %42 : vector<16x16xf32>
    %c0_35 = arith.constant 0 : index
    %c0_36 = arith.constant 0 : index
    %c0_37 = arith.constant 0 : index
    %44 = vector.load %arg14[%c0_35, %c0_36, %c0_37] : memref<1x16x16xf32, #tpu.memory_space<vmem>>, vector<1x16x16xf32>
    %45 = vector.shape_cast %44 : vector<1x16x16xf32> to vector<16x16xf32>
    %46 = vector.shape_cast %43 : vector<16x16xf32> to vector<1x16x16xf32>
    tpu.vector_store %arg14[%c0_35, %c0_36, %c0_37], %46 {strides = array<i32>} : memref<1x16x16xf32, #tpu.memory_space<vmem>>, vector<1x16x16xf32>,
    return
  }
  func.func @transform_0(%arg0: i32) -> (i32, i32, i32) {
    %c0_i32 = arith.constant 0 : i32
    %c0_i32_0 = arith.constant 0 : i32
    %c0_i32_1 = arith.constant 0 : i32
    return %arg0, %c0_i32, %c0_i32_0 : i32, i32, i32
  }
  func.func @transform_1(%arg0: i32) -> (i32, i32) {
    %c0_i32 = arith.constant 0 : i32
    %c0_i32_0 = arith.constant 0 : i32
    %c0_i32_1 = arith.constant 0 : i32
    return %c0_i32, %c0_i32_0 : i32, i32
  }
  func.func @transform_2(%arg0: i32) -> (i32, i32) {
    %c0_i32 = arith.constant 0 : i32
    %c0_i32_0 = arith.constant 0 : i32
    %c0_i32_1 = arith.constant 0 : i32
    return %c0_i32, %c0_i32_0 : i32, i32
  }
  func.func @transform_3(%arg0: i32) -> (i32, i32) {
    %c0_i32 = arith.constant 0 : i32
    %c0_i32_0 = arith.constant 0 : i32
    %c0_i32_1 = arith.constant 0 : i32
    return %c0_i32, %c0_i32_0 : i32, i32
  }
  func.func @transform_4(%arg0: i32) -> (i32, i32) {
    %c0_i32 = arith.constant 0 : i32
    %c0_i32_0 = arith.constant 0 : i32
    %c0_i32_1 = arith.constant 0 : i32
    return %c0_i32, %c0_i32_0 : i32, i32
  }
  func.func @transform_5(%arg0: i32) -> (i32, i32) {
    %c0_i32 = arith.constant 0 : i32
    %c0_i32_0 = arith.constant 0 : i32
    %c0_i32_1 = arith.constant 0 : i32
    return %c0_i32, %c0_i32_0 : i32, i32
  }
  func.func @transform_6(%arg0: i32) -> (i32, i32) {
    %c0_i32 = arith.constant 0 : i32
    %c0_i32_0 = arith.constant 0 : i32
    %c0_i32_1 = arith.constant 0 : i32
    return %c0_i32, %c0_i32_0 : i32, i32
  }
  func.func @transform_7(%arg0: i32) -> (i32, i32) {
    %c0_i32 = arith.constant 0 : i32
    %c0_i32_0 = arith.constant 0 : i32
    %c0_i32_1 = arith.constant 0 : i32
    return %c0_i32, %c0_i32_0 : i32, i32
  }
  func.func @transform_8(%arg0: i32) -> (i32, i32) {
    %c0_i32 = arith.constant 0 : i32
    %c0_i32_0 = arith.constant 0 : i32
    %c0_i32_1 = arith.constant 0 : i32
    return %c0_i32, %c0_i32_0 : i32, i32
  }
  func.func @transform_9(%arg0: i32) -> (i32, i32) {
    %c0_i32 = arith.constant 0 : i32
    %c0_i32_0 = arith.constant 0 : i32
    %c0_i32_1 = arith.constant 0 : i32
    return %c0_i32, %c0_i32_0 : i32, i32
  }
  func.func @transform_10(%arg0: i32) -> (i32, i32) {
    %c0_i32 = arith.constant 0 : i32
    %c0_i32_0 = arith.constant 0 : i32
    %c0_i32_1 = arith.constant 0 : i32
    return %c0_i32, %c0_i32_0 : i32, i32
  }
  func.func @transform_11(%arg0: i32) -> (i32, i32) {
    %c0_i32 = arith.constant 0 : i32
    %c0_i32_0 = arith.constant 0 : i32
    %c0_i32_1 = arith.constant 0 : i32
    return %c0_i32, %c0_i32_0 : i32, i32
  }
  func.func @transform_12(%arg0: i32) -> (i32, i32) {
    %c0_i32 = arith.constant 0 : i32
    %c0_i32_0 = arith.constant 0 : i32
    %c0_i32_1 = arith.constant 0 : i32
    return %c0_i32, %c0_i32_0 : i32, i32
  }
  func.func @transform_13(%arg0: i32) -> (i32, i32, i32) {
    %c0_i32 = arith.constant 0 : i32
    %c0_i32_0 = arith.constant 0 : i32
    %c0_i32_1 = arith.constant 0 : i32
    return %arg0, %c0_i32, %c0_i32_0 : i32, i32, i32
  }
}

</mosaic_0001>

<llo_original>
// kernel: tpu_custom_call.1
$region0: #{tpu_custom_call.1}
  #allocation0 [shape = 'u32[]', space=smem, size = 0x4, offset = 0x4, fixed_abs, tag = 'smem constant byte address 0x4 - core index']
  #allocation1 [shape = 'u32[72,128]{1,0:T(1,128)}', space=vmem, size = 0x9000, scoped, tag = 'internal scratch']
  %s0 = inlined_call_operand.vmem [shape: s32[2,1,16], index: 0, kind: input, shape index: {}]
  %s1 = inlined_call_operand.vmem [shape: f32[11,32], index: 1, kind: input, shape index: {}]
  %s2 = inlined_call_operand.vmem [shape: f32[32,16], index: 2, kind: input, shape index: {}]
  %s3 = inlined_call_operand.vmem [shape: f32[1,16], index: 3, kind: input, shape index: {}]
  %s4 = inlined_call_operand.vmem [shape: f32[16,8], index: 4, kind: input, shape index: {}]
  %s5 = inlined_call_operand.vmem [shape: f32[16,8], index: 5, kind: input, shape index: {}]
  %s6 = inlined_call_operand.vmem [shape: f32[32,8], index: 6, kind: input, shape index: {}]
  %s7 = inlined_call_operand.vmem [shape: f32[1,8], index: 7, kind: input, shape index: {}]
  %s8 = inlined_call_operand.vmem [shape: f32[8,32], index: 8, kind: input, shape index: {}]
  %s9 = inlined_call_operand.vmem [shape: f32[1,32], index: 9, kind: input, shape index: {}]
  %s10 = inlined_call_operand.vmem [shape: f32[16,1], index: 10, kind: input, shape index: {}]
  %s11 = inlined_call_operand.vmem [shape: f32[32,16], index: 11, kind: input, shape index: {}]
  %s12 = inlined_call_operand.vmem [shape: f32[1,16], index: 12, kind: input, shape index: {}]
  %s13 = inlined_call_operand.hbm [shape: f32[2,16,16], index: 13, kind: output, shape index: {}]
  %s14 = sld [smem:[#allocation0]]
  $region85: #{tpu_custom_call.1} parent=0
    _
  %s16 = ssub.s32 1, %s14
  %s17 = scalar_select 0, %s16, %s14
  $region1: #{tpu_custom_call.1} parent=0
    #allocation2 [shape = 'u8[16384]{0}', space=vmem, size = 0x4000, scoped, tag = 'output window, operand 0']
    #allocation3 [shape = 's32[2]{0}', space=sflag, size = 0x8, scoped, tag = 'scoped memory for tpu_custom_call.1']
    %18 = vsyncpa [#allocation3], 0
    %s19 = scalar_lea.sflag [#allocation3], 1
    %20 = vsyncpa %s19, 0
    loop: start=0, step=1, limit=4
    $region2: #{tpu_custom_call.1} parent=1 // loop_pre_header
      _
    $region3: #{tpu_custom_call.1} parent=1 // loop_header
      %s22 = sphi 0, %s26
      %p23 = scmp.ge.s32.totalorder %s22, 4
      %s32 = sphi 0, %s34
      %s35 = sphi 0, %s32
      %s36 = sphi 0, %s35
      %s52 = sphi 0, %s36
      %s56 = sphi 0, %s56
      %s58 = sphi 0, %s56
      %s59 = sphi 0, %s58
      %s73 = sphi 0, %s59
      %s77 = sphi 0, %s77
      %s79 = sphi 0, %s77
      %s80 = sphi 0, %s79
      %s94 = sphi 0, %s80
      %s98 = sphi 0, %s98
      %s100 = sphi 0, %s98
      %s101 = sphi 0, %s100
      %s115 = sphi 0, %s101
      %s119 = sphi 0, %s119
      %s121 = sphi 0, %s119
      %s122 = sphi 0, %s121
      %s136 = sphi 0, %s122
      %s140 = sphi 0, %s140
      %s142 = sphi 0, %s140
      %s143 = sphi 0, %s142
      %s157 = sphi 0, %s143
      %s161 = sphi 0, %s161
      %s163 = sphi 0, %s161
      %s164 = sphi 0, %s163
      %s178 = sphi 0, %s164
      %s182 = sphi 0, %s182
      %s184 = sphi 0, %s182
      %s185 = sphi 0, %s184
      %s199 = sphi 0, %s185
      %s203 = sphi 0, %s203
      %s205 = sphi 0, %s203
      %s206 = sphi 0, %s205
      %s220 = sphi 0, %s206
      %s224 = sphi 0, %s224
      %s226 = sphi 0, %s224
      %s227 = sphi 0, %s226
      %s241 = sphi 0, %s227
      %s245 = sphi 0, %s245
      %s247 = sphi 0, %s245
      %s248 = sphi 0, %s247
      %s262 = sphi 0, %s248
      %s266 = sphi 0, %s266
      %s268 = sphi 0, %s266
      %s269 = sphi 0, %s268
      %s283 = sphi 0, %s269
      %s287 = sphi 0, %s287
      %s289 = sphi 0, %s287
      %s290 = sphi 0, %s289
      %s304 = sphi 0, %s290
      %s310 = sphi 0, %s312
      %s313 = sphi 0, %s310
      %s314 = sphi 0, %s313
      %s330 = sphi 0, %s314
    $region4: #{tpu_custom_call.1} parent=1 // loop_header_branch
      %25 = sbr.rel (%p23) target = $region8
    $region5: #{tpu_custom_call.1} parent=1 // loop_body
      %s27 = ssub.s32 %s22, 1
      %s28 = ssub.s32 %s22, 2
      %s29 = sadd.s32 %s22, 1
      %s30 = ssub.s32 %s22, %s29
      %p31 = scmp.eq.s32.totalorder %s30, 0
      %s33 = sadd.s32 %s32, 1
      %s34 = scalar_select %p31, %s32, %s33
      %p37 = pneg %p31
      %p38 = scmp.eq.s32.totalorder %s22, 1
      %p39 = por %p37, %p38
      %p40 = scmp.ne.s32.totalorder %s32, %s35
      %p41 = scmp.eq.s32.totalorder %s22, 0
      %p42 = por %p40, %p41
      %p43 = scmp.ne.s32.totalorder %s32, %s35
      %p44 = scmp.eq.s32.totalorder %s27, 1
      %p45 = por %p43, %p44
      %p46 = scmp.ne.s32.totalorder %s35, %s36
      %p47 = scmp.eq.s32.totalorder %s27, 0
      %p48 = por %p46, %p47
      %p49 = scmp.ne.s32.totalorder %s35, %s36
      %p50 = scmp.eq.s32.totalorder %s28, 1
      %p51 = por %p49, %p50
      %p53 = scmp.ne.s32.totalorder %s36, %s52
      %p54 = scmp.eq.s32.totalorder %s28, 0
      %p55 = por %p53, %p54
      %s57 = sadd.s32 %s56, 1
      %p60 = scmp.eq.s32.totalorder %s22, 1
      %p61 = scmp.ne.s32.totalorder %s56, %s58
      %p62 = scmp.eq.s32.totalorder %s22, 0
      %p63 = por %p61, %p62
      %p64 = scmp.ne.s32.totalorder %s56, %s58
      %p65 = scmp.eq.s32.totalorder %s27, 1
      %p66 = por %p64, %p65
      %p67 = scmp.ne.s32.totalorder %s58, %s59
      %p68 = scmp.eq.s32.totalorder %s27, 0
      %p69 = por %p67, %p68
      %p70 = scmp.ne.s32.totalorder %s58, %s59
      %p71 = scmp.eq.s32.totalorder %s28, 1
      %p72 = por %p70, %p71
      %p74 = scmp.ne.s32.totalorder %s59, %s73
      %p75 = scmp.eq.s32.totalorder %s28, 0
      %p76 = por %p74, %p75
      %s78 = sadd.s32 %s77, 1
      %p81 = scmp.eq.s32.totalorder %s22, 1
      %p82 = scmp.ne.s32.totalorder %s77, %s79
      %p83 = scmp.eq.s32.totalorder %s22, 0
      %p84 = por %p82, %p83
      %p85 = scmp.ne.s32.totalorder %s77, %s79
      %p86 = scmp.eq.s32.totalorder %s27, 1
      %p87 = por %p85, %p86
      %p88 = scmp.ne.s32.totalorder %s79, %s80
      %p89 = scmp.eq.s32.totalorder %s27, 0
      %p90 = por %p88, %p89
      %p91 = scmp.ne.s32.totalorder %s79, %s80
      %p92 = scmp.eq.s32.totalorder %s28, 1
      %p93 = por %p91, %p92
      %p95 = scmp.ne.s32.totalorder %s80, %s94
      %p96 = scmp.eq.s32.totalorder %s28, 0
      %p97 = por %p95, %p96
      %s99 = sadd.s32 %s98, 1
      %p102 = scmp.eq.s32.totalorder %s22, 1
      %p103 = scmp.ne.s32.totalorder %s98, %s100
      %p104 = scmp.eq.s32.totalorder %s22, 0
      %p105 = por %p103, %p104
      %p106 = scmp.ne.s32.totalorder %s98, %s100
      %p107 = scmp.eq.s32.totalorder %s27, 1
      %p108 = por %p106, %p107
      %p109 = scmp.ne.s32.totalorder %s100, %s101
      %p110 = scmp.eq.s32.totalorder %s27, 0
      %p111 = por %p109, %p110
      %p112 = scmp.ne.s32.totalorder %s100, %s101
      %p113 = scmp.eq.s32.totalorder %s28, 1
      %p114 = por %p112, %p113
      %p116 = scmp.ne.s32.totalorder %s101, %s115
      %p117 = scmp.eq.s32.totalorder %s28, 0
      %p118 = por %p116, %p117
      %s120 = sadd.s32 %s119, 1
      %p123 = scmp.eq.s32.totalorder %s22, 1
      %p124 = scmp.ne.s32.totalorder %s119, %s121
      %p125 = scmp.eq.s32.totalorder %s22, 0
      %p126 = por %p124, %p125
      %p127 = scmp.ne.s32.totalorder %s119, %s121
      %p128 = scmp.eq.s32.totalorder %s27, 1
      %p129 = por %p127, %p128
      %p130 = scmp.ne.s32.totalorder %s121, %s122
      %p131 = scmp.eq.s32.totalorder %s27, 0
      %p132 = por %p130, %p131
      %p133 = scmp.ne.s32.totalorder %s121, %s122
      %p134 = scmp.eq.s32.totalorder %s28, 1
      %p135 = por %p133, %p134
      %p137 = scmp.ne.s32.totalorder %s122, %s136
      %p138 = scmp.eq.s32.totalorder %s28, 0
      %p139 = por %p137, %p138
      %s141 = sadd.s32 %s140, 1
      %p144 = scmp.eq.s32.totalorder %s22, 1
      %p145 = scmp.ne.s32.totalorder %s140, %s142
      %p146 = scmp.eq.s32.totalorder %s22, 0
      %p147 = por %p145, %p146
      %p148 = scmp.ne.s32.totalorder %s140, %s142
      %p149 = scmp.eq.s32.totalorder %s27, 1
      %p150 = por %p148, %p149
      %p151 = scmp.ne.s32.totalorder %s142, %s143
      %p152 = scmp.eq.s32.totalorder %s27, 0
      %p153 = por %p151, %p152
      %p154 = scmp.ne.s32.totalorder %s142, %s143
      %p155 = scmp.eq.s32.totalorder %s28, 1
      %p156 = por %p154, %p155
      %p158 = scmp.ne.s32.totalorder %s143, %s157
      %p159 = scmp.eq.s32.totalorder %s28, 0
      %p160 = por %p158, %p159
      %s162 = sadd.s32 %s161, 1
      %p165 = scmp.eq.s32.totalorder %s22, 1
      %p166 = scmp.ne.s32.totalorder %s161, %s163
      %p167 = scmp.eq.s32.totalorder %s22, 0
      %p168 = por %p166, %p167
      %p169 = scmp.ne.s32.totalorder %s161, %s163
      %p170 = scmp.eq.s32.totalorder %s27, 1
      %p171 = por %p169, %p170
      %p172 = scmp.ne.s32.totalorder %s163, %s164
      %p173 = scmp.eq.s32.totalorder %s27, 0
      %p174 = por %p172, %p173
      %p175 = scmp.ne.s32.totalorder %s163, %s164
      %p176 = scmp.eq.s32.totalorder %s28, 1
      %p177 = por %p175, %p176
      %p179 = scmp.ne.s32.totalorder %s164, %s178
      %p180 = scmp.eq.s32.totalorder %s28, 0
      %p181 = por %p179, %p180
      %s183 = sadd.s32 %s182, 1
      %p186 = scmp.eq.s32.totalorder %s22, 1
      %p187 = scmp.ne.s32.totalorder %s182, %s184
      %p188 = scmp.eq.s32.totalorder %s22, 0
      %p189 = por %p187, %p188
      %p190 = scmp.ne.s32.totalorder %s182, %s184
      %p191 = scmp.eq.s32.totalorder %s27, 1
      %p192 = por %p190, %p191
      %p193 = scmp.ne.s32.totalorder %s184, %s185
      %p194 = scmp.eq.s32.totalorder %s27, 0
      %p195 = por %p193, %p194
      %p196 = scmp.ne.s32.totalorder %s184, %s185
      %p197 = scmp.eq.s32.totalorder %s28, 1
      %p198 = por %p196, %p197
      %p200 = scmp.ne.s32.totalorder %s185, %s199
      %p201 = scmp.eq.s32.totalorder %s28, 0
      %p202 = por %p200, %p201
      %s204 = sadd.s32 %s203, 1
      %p207 = scmp.eq.s32.totalorder %s22, 1
      %p208 = scmp.ne.s32.totalorder %s203, %s205
      %p209 = scmp.eq.s32.totalorder %s22, 0
      %p210 = por %p208, %p209
      %p211 = scmp.ne.s32.totalorder %s203, %s205
      %p212 = scmp.eq.s32.totalorder %s27, 1
      %p213 = por %p211, %p212
      %p214 = scmp.ne.s32.totalorder %s205, %s206
      %p215 = scmp.eq.s32.totalorder %s27, 0
      %p216 = por %p214, %p215
      %p217 = scmp.ne.s32.totalorder %s205, %s206
      %p218 = scmp.eq.s32.totalorder %s28, 1
      %p219 = por %p217, %p218
      %p221 = scmp.ne.s32.totalorder %s206, %s220
      %p222 = scmp.eq.s32.totalorder %s28, 0
      %p223 = por %p221, %p222
      %s225 = sadd.s32 %s224, 1
      %p228 = scmp.eq.s32.totalorder %s22, 1
      %p229 = scmp.ne.s32.totalorder %s224, %s226
      %p230 = scmp.eq.s32.totalorder %s22, 0
      %p231 = por %p229, %p230
      %p232 = scmp.ne.s32.totalorder %s224, %s226
      %p233 = scmp.eq.s32.totalorder %s27, 1
      %p234 = por %p232, %p233
      %p235 = scmp.ne.s32.totalorder %s226, %s227
      %p236 = scmp.eq.s32.totalorder %s27, 0
      %p237 = por %p235, %p236
      %p238 = scmp.ne.s32.totalorder %s226, %s227
      %p239 = scmp.eq.s32.totalorder %s28, 1
      %p240 = por %p238, %p239
      %p242 = scmp.ne.s32.totalorder %s227, %s241
      %p243 = scmp.eq.s32.totalorder %s28, 0
      %p244 = por %p242, %p243
      %s246 = sadd.s32 %s245, 1
      %p249 = scmp.eq.s32.totalorder %s22, 1
      %p250 = scmp.ne.s32.totalorder %s245, %s247
      %p251 = scmp.eq.s32.totalorder %s22, 0
      %p252 = por %p250, %p251
      %p253 = scmp.ne.s32.totalorder %s245, %s247
      %p254 = scmp.eq.s32.totalorder %s27, 1
      %p255 = por %p253, %p254
      %p256 = scmp.ne.s32.totalorder %s247, %s248
      %p257 = scmp.eq.s32.totalorder %s27, 0
      %p258 = por %p256, %p257
      %p259 = scmp.ne.s32.totalorder %s247, %s248
      %p260 = scmp.eq.s32.totalorder %s28, 1
      %p261 = por %p259, %p260
      %p263 = scmp.ne.s32.totalorder %s248, %s262
      %p264 = scmp.eq.s32.totalorder %s28, 0
      %p265 = por %p263, %p264
      %s267 = sadd.s32 %s266, 1
      %p270 = scmp.eq.s32.totalorder %s22, 1
      %p271 = scmp.ne.s32.totalorder %s266, %s268
      %p272 = scmp.eq.s32.totalorder %s22, 0
      %p273 = por %p271, %p272
      %p274 = scmp.ne.s32.totalorder %s266, %s268
      %p275 = scmp.eq.s32.totalorder %s27, 1
      %p276 = por %p274, %p275
      %p277 = scmp.ne.s32.totalorder %s268, %s269
      %p278 = scmp.eq.s32.totalorder %s27, 0
      %p279 = por %p277, %p278
      %p280 = scmp.ne.s32.totalorder %s268, %s269
      %p281 = scmp.eq.s32.totalorder %s28, 1
      %p282 = por %p280, %p281
      %p284 = scmp.ne.s32.totalorder %s269, %s283
      %p285 = scmp.eq.s32.totalorder %s28, 0
      %p286 = por %p284, %p285
      %s288 = sadd.s32 %s287, 1
      %p291 = scmp.eq.s32.totalorder %s22, 1
      %p292 = scmp.ne.s32.totalorder %s287, %s289
      %p293 = scmp.eq.s32.totalorder %s22, 0
      %p294 = por %p292, %p293
      %p295 = scmp.ne.s32.totalorder %s287, %s289
      %p296 = scmp.eq.s32.totalorder %s27, 1
      %p297 = por %p295, %p296
      %p298 = scmp.ne.s32.totalorder %s289, %s290
      %p299 = scmp.eq.s32.totalorder %s27, 0
      %p300 = por %p298, %p299
      %p301 = scmp.ne.s32.totalorder %s289, %s290
      %p302 = scmp.eq.s32.totalorder %s28, 1
      %p303 = por %p301, %p302
      %p305 = scmp.ne.s32.totalorder %s290, %s304
      %p306 = scmp.eq.s32.totalorder %s28, 0
      %p307 = por %p305, %p306
      %s308 = ssub.s32 %s22, %s29
      %p309 = scmp.eq.s32.totalorder %s308, 0
      %s311 = sadd.s32 %s310, 1
      %s312 = scalar_select %p309, %s310, %s311
      %p315 = pneg %p309
      %p316 = scmp.eq.s32.totalorder %s22, 1
      %p317 = por %p315, %p316
      %p318 = scmp.ne.s32.totalorder %s310, %s313
      %p319 = scmp.eq.s32.totalorder %s22, 0
      %p320 = por %p318, %p319
      %p321 = scmp.ne.s32.totalorder %s310, %s313
      %p322 = scmp.eq.s32.totalorder %s27, 1
      %p323 = por %p321, %p322
      %p324 = scmp.ne.s32.totalorder %s313, %s314
      %p325 = scmp.eq.s32.totalorder %s27, 0
      %p326 = por %p324, %p325
      %p327 = scmp.ne.s32.totalorder %s313, %s314
      %p328 = scmp.eq.s32.totalorder %s28, 1
      %p329 = por %p327, %p328
      %p331 = scmp.ne.s32.totalorder %s314, %s330
      %p332 = scmp.eq.s32.totalorder %s28, 0
      %p333 = por %p331, %p332
      %p334 = scmp.le.s32.totalorder 1, %s22
      %p335 = scmp.lt.s32.totalorder %s22, 3
      %p336 = pnand %p334, %p335
      %p337 = pneg %p336
      // Predicated region
      $region9: #{tpu_custom_call.1} parent=5 // pred_check
        _
      $region10: #{tpu_custom_call.1} parent=5 // pred_check_branch
        %339 = sbr.rel (%p336) target = $region12
      $region11: #{tpu_custom_call.1} parent=5 // pred_region
        %s340 = ssub.s32 %s22, 1
        // Predicated region
        $region13: #{tpu_custom_call.1} parent=11 // pred_check
          %p341 = pneg %p69
        $region14: #{tpu_custom_call.1} parent=11 // pred_check_branch
          %343 = sbr.rel (%p341) target = $region16
        $region15: #{tpu_custom_call.1} parent=11 // pred_region
          _
        $region16: #{tpu_custom_call.1} parent=11 // pred_fallthru
          _
        // Predicated region
        $region17: #{tpu_custom_call.1} parent=11 // pred_check
          %p344 = pneg %p90
        $region18: #{tpu_custom_call.1} parent=11 // pred_check_branch
          %346 = sbr.rel (%p344) target = $region20
        $region19: #{tpu_custom_call.1} parent=11 // pred_region
          _
        $region20: #{tpu_custom_call.1} parent=11 // pred_fallthru
          _
        // Predicated region
        $region21: #{tpu_custom_call.1} parent=11 // pred_check
          %p347 = pneg %p111
        $region22: #{tpu_custom_call.1} parent=11 // pred_check_branch
          %349 = sbr.rel (%p347) target = $region24
        $region23: #{tpu_custom_call.1} parent=11 // pred_region
          _
        $region24: #{tpu_custom_call.1} parent=11 // pred_fallthru
          _
        // Predicated region
        $region25: #{tpu_custom_call.1} parent=11 // pred_check
          %p350 = pneg %p132
        $region26: #{tpu_custom_call.1} parent=11 // pred_check_branch
          %352 = sbr.rel (%p350) target = $region28
        $region27: #{tpu_custom_call.1} parent=11 // pred_region
          _
        $region28: #{tpu_custom_call.1} parent=11 // pred_fallthru
          _
        // Predicated region
        $region29: #{tpu_custom_call.1} parent=11 // pred_check
          %p353 = pneg %p153
        $region30: #{tpu_custom_call.1} parent=11 // pred_check_branch
          %355 = sbr.rel (%p353) target = $region32
        $region31: #{tpu_custom_call.1} parent=11 // pred_region
          _
        $region32: #{tpu_custom_call.1} parent=11 // pred_fallthru
          _
        // Predicated region
        $region33: #{tpu_custom_call.1} parent=11 // pred_check
          %p356 = pneg %p174
        $region34: #{tpu_custom_call.1} parent=11 // pred_check_branch
          %358 = sbr.rel (%p356) target = $region36
        $region35: #{tpu_custom_call.1} parent=11 // pred_region
          _
        $region36: #{tpu_custom_call.1} parent=11 // pred_fallthru
          _
        // Predicated region
        $region37: #{tpu_custom_call.1} parent=11 // pred_check
          %p359 = pneg %p195
        $region38: #{tpu_custom_call.1} parent=11 // pred_check_branch
          %361 = sbr.rel (%p359) target = $region40
        $region39: #{tpu_custom_call.1} parent=11 // pred_region
          _
        $region40: #{tpu_custom_call.1} parent=11 // pred_fallthru
          _
        // Predicated region
        $region41: #{tpu_custom_call.1} parent=11 // pred_check
          %p362 = pneg %p216
        $region42: #{tpu_custom_call.1} parent=11 // pred_check_branch
          %364 = sbr.rel (%p362) target = $region44
        $region43: #{tpu_custom_call.1} parent=11 // pred_region
          _
        $region44: #{tpu_custom_call.1} parent=11 // pred_fallthru
          _
        // Predicated region
        $region45: #{tpu_custom_call.1} parent=11 // pred_check
          %p365 = pneg %p237
        $region46: #{tpu_custom_call.1} parent=11 // pred_check_branch
          %367 = sbr.rel (%p365) target = $region48
        $region47: #{tpu_custom_call.1} parent=11 // pred_region
          _
        $region48: #{tpu_custom_call.1} parent=11 // pred_fallthru
          _
        // Predicated region
        $region49: #{tpu_custom_call.1} parent=11 // pred_check
          %p368 = pneg %p258
        $region50: #{tpu_custom_call.1} parent=11 // pred_check_branch
          %370 = sbr.rel (%p368) target = $region52
        $region51: #{tpu_custom_call.1} parent=11 // pred_region
          _
        $region52: #{tpu_custom_call.1} parent=11 // pred_fallthru
          _
        // Predicated region
        $region53: #{tpu_custom_call.1} parent=11 // pred_check
          %p371 = pneg %p279
        $region54: #{tpu_custom_call.1} parent=11 // pred_check_branch
          %373 = sbr.rel (%p371) target = $region56
        $region55: #{tpu_custom_call.1} parent=11 // pred_region
          _
        $region56: #{tpu_custom_call.1} parent=11 // pred_fallthru
          _
        // Predicated region
        $region57: #{tpu_custom_call.1} parent=11 // pred_check
          %p374 = pneg %p300
        $region58: #{tpu_custom_call.1} parent=11 // pred_check_branch
          %376 = sbr.rel (%p374) target = $region60
        $region59: #{tpu_custom_call.1} parent=11 // pred_region
          _
        $region60: #{tpu_custom_call.1} parent=11 // pred_fallthru
          _
      $region12: #{tpu_custom_call.1} parent=5 // pred_fallthru
        _
      %p377 = scmp.lt.s32.totalorder %s22, 2
      // Predicated region
      $region61: #{tpu_custom_call.1} parent=5 // pred_check
        %p378 = pneg %p377
      $region62: #{tpu_custom_call.1} parent=5 // pred_check_branch
        %380 = sbr.rel (%p378) target = $region64
      $region63: #{tpu_custom_call.1} parent=5 // pred_region
        // Predicated region
        $region65: #{tpu_custom_call.1} parent=63 // pred_check
          %p381 = pneg %p42
        $region66: #{tpu_custom_call.1} parent=63 // pred_check_branch
          %383 = sbr.rel (%p381) target = $region68
        $region67: #{tpu_custom_call.1} parent=63 // pred_region
          %p384 = scmp.lt.s32.totalorder %s22, 1
          %s385 = scalar_select %p384, %s22, 1
          %s386 = scalar_lea.vmem %s0, %s385
        $region68: #{tpu_custom_call.1} parent=63 // pred_fallthru
          _
      $region64: #{tpu_custom_call.1} parent=5 // pred_fallthru
        _
      %p387 = scmp.le.s32.totalorder 1, %s22
      %p388 = scmp.lt.s32.totalorder %s22, 3
      %p389 = pnand %p387, %p388
      %p390 = pneg %p389
      // Predicated region
      $region69: #{tpu_custom_call.1} parent=5 // pred_check
        _
      $region70: #{tpu_custom_call.1} parent=5 // pred_check_branch
        %392 = sbr.rel (%p389) target = $region72
      $region71: #{tpu_custom_call.1} parent=5 // pred_region
        %s393 = ssub.s32 %s22, 1
        %p394 = scmp.lt.s32.totalorder %s27, 1
        %s395 = scalar_select %p394, %s27, 1
        %s396 = scalar_lea.vmem %s0, %s395
        %p397 = pneg %p48
        %p398 = pneg %p45
        %p399 = pneg %p69
        %p400 = pneg %p66
        %p401 = pneg %p90
        %p402 = pneg %p87
        %p403 = pneg %p111
        %p404 = pneg %p108
        %p405 = pneg %p132
        %p406 = pneg %p129
        %p407 = pneg %p153
        %p408 = pneg %p150
        %p409 = pneg %p174
        %p410 = pneg %p171
        %p411 = pneg %p195
        %p412 = pneg %p192
        %p413 = pneg %p216
        %p414 = pneg %p213
        %p415 = pneg %p237
        %p416 = pneg %p234
        %p417 = pneg %p258
        %p418 = pneg %p255
        %p419 = pneg %p279
        %p420 = pneg %p276
        %p421 = pneg %p300
        %p422 = pneg %p297
        %p423 = pneg %p326
        %p424 = pneg %p323
        %s425 = sand.u32 %s313, 1
        %s426 = scalar_lea.sflag [#allocation3], %s425
        %s427 = sand.u32 %s313, 1
        %s428 = smul.addr %s427, 16
        %s429 = scalar_lea.vmem [#allocation2], %s428
        %p430 = scmp.lt.s32.totalorder %s27, 1
        %s431 = scalar_select %p430, %s27, 1
        %s432 = scalar_lea.vmem %s0, %s431
        %v433 = vld [vmem:[%s432] sm:$0x1]
        %v434 = vlaneseq
        %v435 = vshrl.u32 %v434, 7
        %v436 = vadd.s32 %v435, 8
        %v437 = vperm.slane %v433, 0
        %vm438 = vcmp.eq.s32.totalorder %v435, %v437
        %vm439 = vcmp.eq.s32.totalorder %v436, %v437
        %v440 = vsel %vm438, 1, 0
        %v441 = vsel %vm439, 1, 0
        %v442 = vcvt.s32.f32 %v440
        %v443 = vcvt.s32.f32 %v441
        %v444 = vld [vmem:[%s1] sm:$0xff]
        %v445 = vld [vmem:[%s1 + $0x8] sm:$0x7]
        %446 = vxpose.xlu0.b32.start [1/16] %v442, 128
        %447 = vxpose.xlu0.b32.cont [2/16] %v443, 128
        %448 = vxpose.xlu0.b32.cont [3/16] 0.0, 128
        %449 = vxpose.xlu0.b32.cont [4/16] 0.0, 128
        %450 = vxpose.xlu0.b32.cont [5/16] 0.0, 128
        %451 = vxpose.xlu0.b32.cont [6/16] 0.0, 128
        %452 = vxpose.xlu0.b32.cont [7/16] 0.0, 128
        %453 = vxpose.xlu0.b32.cont [8/16] 0.0, 128
        %454 = vxpose.xlu0.b32.cont [9/16] 0.0, 128
        %455 = vxpose.xlu0.b32.cont [10/16] 0.0, 128
        %456 = vxpose.xlu0.b32.cont [11/16] 0.0, 128
        %457 = vxpose.xlu0.b32.cont [12/16] 0.0, 128
        %458 = vxpose.xlu0.b32.cont [13/16] 0.0, 128
        %459 = vxpose.xlu0.b32.cont [14/16] 0.0, 128
        %460 = vxpose.xlu0.b32.cont [15/16] 0.0, 128
        %461 = vxpose.xlu0.b32.end [16/16] 0.0, 128
        %v462 = vpop.trf.xlu0
        %v463 = vpop.trf.xlu0
        %v464 = vpop.trf.xlu0
        %v465 = vpop.trf.xlu0
        %v466 = vpop.trf.xlu0
        %v467 = vpop.trf.xlu0
        %v468 = vpop.trf.xlu0
        %v469 = vpop.trf.xlu0
        %v470 = vpop.trf.xlu0
        %v471 = vpop.trf.xlu0
        %v472 = vpop.trf.xlu0
        %v473 = vpop.trf.xlu0
        %v474 = vpop.trf.xlu0
        %v475 = vpop.trf.xlu0
        %v476 = vpop.trf.xlu0
        %v477 = vpop.trf.xlu0
        %vm478 = vcmask 89088
        %v480 = vsel %vm478, %v462, 0
        %v483 = vsel %vm478, %v463, 0
        %vm485 = vcmask 1042432
        %v487 = vsel %vm485, %v445, 0
        %489 = vmatpush.msra.mxu0 0.0
        %490 = vmatpush.msra.mxu0 0.0
        %491 = vmatpush.msra.mxu0 0.0
        %492 = vmatpush.msra.mxu0 0.0
        %493 = vmatpush.msra.mxu0 0.0
        %494 = vmatpush.msra.mxu0 0.0
        %495 = vmatpush.msra.mxu0 0.0
        %496 = vmatpush.msra.mxu0 0.0
        %497 = vmatpush.msra.mxu0 0.0
        %498 = vmatpush.msra.mxu0 0.0
        %499 = vmatpush.msra.mxu0 0.0
        %500 = vmatpush.msra.mxu0 0.0
        %501 = vmatpush.msra.mxu0 0.0
        %502 = vmatpush.msra.mxu0 0.0
        %503 = vmatpush.msra.mxu0 %v487
        %504 = vmatpush.msra.mxu0 %v444
        %505 = vmatmul.f32.gmra.mxu0 %v480
        %v506 = vpop.f32.mrf.mxu0
        %v507 = vadd.f32 0.0, %v506
        %508 = vmatmul.f32.gmra.mxu0 %v483
        %v509 = vpop.f32.mrf.mxu0
        %v510 = vadd.f32 0.0, %v509
        %511 = vdwg.mxu0
        %v512 = vld [vmem:[%s2] sm:$0xff]
        %v513 = vld [vmem:[%s2 + $0x8] sm:$0xff]
        %v514 = vld [vmem:[%s2 + $0x10] sm:$0xff]
        %v515 = vld [vmem:[%s2 + $0x18] sm:$0xff]
        %v516 = vld [vmem:[%s3] sm:$0x1]
        %v518 = vperm.slane %v516, 0
        %vm520 = vcmask 261120
        %v522 = vsel %vm520, %v507, 0
        %v525 = vsel %vm520, %v510, 0
        %527 = vmatpush.msra.mxu0 0.0
        %528 = vmatpush.msra.mxu0 0.0
        %529 = vmatpush.msra.mxu0 0.0
        %530 = vmatpush.msra.mxu0 0.0
        %531 = vmatpush.msra.mxu0 0.0
        %532 = vmatpush.msra.mxu0 0.0
        %533 = vmatpush.msra.mxu0 0.0
        %534 = vmatpush.msra.mxu0 0.0
        %535 = vmatpush.msra.mxu0 0.0
        %536 = vmatpush.msra.mxu0 0.0
        %537 = vmatpush.msra.mxu0 0.0
        %538 = vmatpush.msra.mxu0 0.0
        %539 = vmatpush.msra.mxu0 %v515
        %540 = vmatpush.msra.mxu0 %v514
        %541 = vmatpush.msra.mxu0 %v513
        %542 = vmatpush.msra.mxu0 %v512
        %543 = vmatmul.f32.gmra.mxu0 %v522
        %v544 = vpop.f32.mrf.mxu0
        %v545 = vadd.f32 %v518, %v544
        %546 = vmatmul.f32.gmra.mxu0 %v525
        %v547 = vpop.f32.mrf.mxu0
        %v548 = vadd.f32 %v518, %v547
        %549 = vdwg.mxu0
        %v550 = vld [vmem:[%s4] sm:$0xff]
        %v551 = vld [vmem:[%s4 + $0x8] sm:$0xff]
        %vm552 = vcmask 130048
        %v554 = vsel %vm552, %v545, 0
        %v557 = vsel %vm552, %v548, 0
        %559 = vmatpush.msra.mxu0 0.0
        %560 = vmatpush.msra.mxu0 0.0
        %561 = vmatpush.msra.mxu0 0.0
        %562 = vmatpush.msra.mxu0 0.0
        %563 = vmatpush.msra.mxu0 0.0
        %564 = vmatpush.msra.mxu0 0.0
        %565 = vmatpush.msra.mxu0 0.0
        %566 = vmatpush.msra.mxu0 0.0
        %567 = vmatpush.msra.mxu0 0.0
        %568 = vmatpush.msra.mxu0 0.0
        %569 = vmatpush.msra.mxu0 0.0
        %570 = vmatpush.msra.mxu0 0.0
        %571 = vmatpush.msra.mxu0 0.0
        %572 = vmatpush.msra.mxu0 0.0
        %573 = vmatpush.msra.mxu0 %v551
        %574 = vmatpush.msra.mxu0 %v550
        %575 = vmatmul.f32.gmra.mxu0 %v554
        %v576 = vpop.f32.mrf.mxu0
        %v577 = vadd.f32 0.0, %v576
        %578 = vmatmul.f32.gmra.mxu0 %v557
        %v579 = vpop.f32.mrf.mxu0
        %v580 = vadd.f32 0.0, %v579
        %581 = vdwg.mxu0
        %v582 = vld [vmem:[%s5] sm:$0xff]
        %v583 = vld [vmem:[%s5 + $0x8] sm:$0xff]
        %584 = vmatpush.msra.mxu0 0.0
        %585 = vmatpush.msra.mxu0 0.0
        %586 = vmatpush.msra.mxu0 0.0
        %587 = vmatpush.msra.mxu0 0.0
        %588 = vmatpush.msra.mxu0 0.0
        %589 = vmatpush.msra.mxu0 0.0
        %590 = vmatpush.msra.mxu0 0.0
        %591 = vmatpush.msra.mxu0 0.0
        %592 = vmatpush.msra.mxu0 0.0
        %593 = vmatpush.msra.mxu0 0.0
        %594 = vmatpush.msra.mxu0 0.0
        %595 = vmatpush.msra.mxu0 0.0
        %596 = vmatpush.msra.mxu0 0.0
        %597 = vmatpush.msra.mxu0 0.0
        %598 = vmatpush.msra.mxu0 %v583
        %599 = vmatpush.msra.mxu0 %v582
        %600 = vmatmul.f32.gmra.mxu0 %v554
        %v601 = vpop.f32.mrf.mxu0
        %v602 = vadd.f32 0.0, %v601
        %603 = vmatmul.f32.gmra.mxu0 %v557
        %v604 = vpop.f32.mrf.mxu0
        %v605 = vadd.f32 0.0, %v604
        %606 = vdwg.mxu0
        %v607 = vld [vmem:[%s6] sm:$0xff]
        %v608 = vld [vmem:[%s6 + $0x8] sm:$0xff]
        %v609 = vld [vmem:[%s6 + $0x10] sm:$0xff]
        %v610 = vld [vmem:[%s6 + $0x18] sm:$0xff]
        %v611 = vld [vmem:[%s7] sm:$0x1]
        %v613 = vperm.slane %v611, 0
        %615 = vmatpush.msra.mxu0 0.0
        %616 = vmatpush.msra.mxu0 0.0
        %617 = vmatpush.msra.mxu0 0.0
        %618 = vmatpush.msra.mxu0 0.0
        %619 = vmatpush.msra.mxu0 0.0
        %620 = vmatpush.msra.mxu0 0.0
        %621 = vmatpush.msra.mxu0 0.0
        %622 = vmatpush.msra.mxu0 0.0
        %623 = vmatpush.msra.mxu0 0.0
        %624 = vmatpush.msra.mxu0 0.0
        %625 = vmatpush.msra.mxu0 0.0
        %626 = vmatpush.msra.mxu0 0.0
        %627 = vmatpush.msra.mxu0 %v610
        %628 = vmatpush.msra.mxu0 %v609
        %629 = vmatpush.msra.mxu0 %v608
        %630 = vmatpush.msra.mxu0 %v607
        %631 = vmatmul.f32.gmra.mxu0 %v522
        %v632 = vpop.f32.mrf.mxu0
        %v633 = vadd.f32 %v613, %v632
        %634 = vmatmul.f32.gmra.mxu0 %v525
        %v635 = vpop.f32.mrf.mxu0
        %v636 = vadd.f32 %v613, %v635
        %637 = vdwg.mxu0
        %vm638 = vcmask 64512
        %v640 = vsel %vm638, %v577, 0
        %v643 = vsel %vm638, %v580, 0
        %v646 = vsel %vm638, %v633, 0
        %v649 = vsel %vm638, %v636, 0
        %651 = vmatpush.xpose.msra.mxu0 0.0
        %652 = vmatpush.xpose.msra.mxu0 0.0
        %653 = vmatpush.xpose.msra.mxu0 0.0
        %654 = vmatpush.xpose.msra.mxu0 0.0
        %655 = vmatpush.xpose.msra.mxu0 0.0
        %656 = vmatpush.xpose.msra.mxu0 0.0
        %657 = vmatpush.xpose.msra.mxu0 0.0
        %658 = vmatpush.xpose.msra.mxu0 0.0
        %659 = vmatpush.xpose.msra.mxu0 0.0
        %660 = vmatpush.xpose.msra.mxu0 0.0
        %661 = vmatpush.xpose.msra.mxu0 0.0
        %662 = vmatpush.xpose.msra.mxu0 0.0
        %663 = vmatpush.xpose.msra.mxu0 0.0
        %664 = vmatpush.xpose.msra.mxu0 0.0
        %665 = vmatpush.xpose.msra.mxu0 %v649
        %666 = vmatpush.xpose.msra.mxu0 %v646
        %667 = vmatmul.f32.gmra.mxu0 %v640
        %v668 = vpop.f32.mrf.mxu0
        %v669 = vadd.f32 0.0, %v668
        %670 = vmatmul.f32.gmra.mxu0 %v643
        %v671 = vpop.f32.mrf.mxu0
        %v672 = vadd.f32 0.0, %v671
        %673 = vdwg.mxu0
        %v674 = vlaneseq
        %v675 = vand.u32 %v674, 127
        %vm676 = vcmp.le.s32.totalorder %v675, %v435
        %vm677 = vcmp.le.s32.totalorder %v675, %v436
        %v678 = vsel %vm676, %v669, 0.0
        %v679 = vsel %vm677, %v672, 0.0
        %v680 = vld [vmem:[%s10] sm:$0xff]
        %v681 = vld [vmem:[%s10 + $0x8] sm:$0xff]
        %683 = vset.pattern.permute.xlu0 0
        %684 = vperm.xlu0 %683, %v680
        %v685 = vpop.permute.xlu0 %684
        %688 = vset.pattern.permute.xlu0 0
        %689 = vperm.xlu0 %688, %v681
        %v690 = vpop.permute.xlu0 %689
        %v692 = vmul.f32 %v602, %v685
        %v693 = vmul.f32 %v605, %v690
        %v695 = vsel %vm552, %v678, 0
        %v698 = vsel %vm552, %v679, 0
        %700 = vmatpush.msra.mxu0 0.0
        %701 = vmatpush.msra.mxu0 0.0
        %702 = vmatpush.msra.mxu0 0.0
        %703 = vmatpush.msra.mxu0 0.0
        %704 = vmatpush.msra.mxu0 0.0
        %705 = vmatpush.msra.mxu0 0.0
        %706 = vmatpush.msra.mxu0 0.0
        %707 = vmatpush.msra.mxu0 0.0
        %708 = vmatpush.msra.mxu0 0.0
        %709 = vmatpush.msra.mxu0 0.0
        %710 = vmatpush.msra.mxu0 0.0
        %711 = vmatpush.msra.mxu0 0.0
        %712 = vmatpush.msra.mxu0 0.0
        %713 = vmatpush.msra.mxu0 0.0
        %714 = vmatpush.msra.mxu0 %v693
        %715 = vmatpush.msra.mxu0 %v692
        %716 = vmatmul.f32.gmra.mxu0 %v695
        %v717 = vpop.f32.mrf.mxu0
        %v718 = vadd.f32 0.0, %v717
        %719 = vmatmul.f32.gmra.mxu0 %v698
        %v720 = vpop.f32.mrf.mxu0
        %v721 = vadd.f32 0.0, %v720
        %722 = vdwg.mxu0
        %v723 = vld [vmem:[%s8] sm:$0xff]
        %v724 = vld [vmem:[%s9] sm:$0x1]
        %v726 = vperm.slane %v724, 0
        %v729 = vsel %vm638, %v718, 0
        %v732 = vsel %vm638, %v721, 0
        %734 = vmatpush.msra.mxu0 0.0
        %735 = vmatpush.msra.mxu0 0.0
        %736 = vmatpush.msra.mxu0 0.0
        %737 = vmatpush.msra.mxu0 0.0
        %738 = vmatpush.msra.mxu0 0.0
        %739 = vmatpush.msra.mxu0 0.0
        %740 = vmatpush.msra.mxu0 0.0
        %741 = vmatpush.msra.mxu0 0.0
        %742 = vmatpush.msra.mxu0 0.0
        %743 = vmatpush.msra.mxu0 0.0
        %744 = vmatpush.msra.mxu0 0.0
        %745 = vmatpush.msra.mxu0 0.0
        %746 = vmatpush.msra.mxu0 0.0
        %747 = vmatpush.msra.mxu0 0.0
        %748 = vmatpush.msra.mxu0 0.0
        %749 = vmatpush.msra.mxu0 %v723
        %750 = vmatmul.f32.gmra.mxu0 %v729
        %v751 = vpop.f32.mrf.mxu0
        %v752 = vadd.f32 %v726, %v751
        %753 = vmatmul.f32.gmra.mxu0 %v732
        %v754 = vpop.f32.mrf.mxu0
        %v755 = vadd.f32 %v726, %v754
        %756 = vdwg.mxu0
        %v757 = vadd.f32 %v507, %v752
        %v758 = vadd.f32 %v510, %v755
        %v759 = vld [vmem:[%s11] sm:$0xff]
        %v760 = vld [vmem:[%s11 + $0x8] sm:$0xff]
        %v761 = vld [vmem:[%s11 + $0x10] sm:$0xff]
        %v762 = vld [vmem:[%s11 + $0x18] sm:$0xff]
        %v763 = vld [vmem:[%s12] sm:$0x1]
        %v765 = vperm.slane %v763, 0
        %v768 = vsel %vm520, %v757, 0
        %v771 = vsel %vm520, %v758, 0
        %773 = vmatpush.msra.mxu0 0.0
        %774 = vmatpush.msra.mxu0 0.0
        %775 = vmatpush.msra.mxu0 0.0
        %776 = vmatpush.msra.mxu0 0.0
        %777 = vmatpush.msra.mxu0 0.0
        %778 = vmatpush.msra.mxu0 0.0
        %779 = vmatpush.msra.mxu0 0.0
        %780 = vmatpush.msra.mxu0 0.0
        %781 = vmatpush.msra.mxu0 0.0
        %782 = vmatpush.msra.mxu0 0.0
        %783 = vmatpush.msra.mxu0 0.0
        %784 = vmatpush.msra.mxu0 0.0
        %785 = vmatpush.msra.mxu0 %v762
        %786 = vmatpush.msra.mxu0 %v761
        %787 = vmatpush.msra.mxu0 %v760
        %788 = vmatpush.msra.mxu0 %v759
        %789 = vmatmul.f32.gmra.mxu0 %v768
        %v790 = vpop.f32.mrf.mxu0
        %v791 = vadd.f32 %v765, %v790
        %792 = vmatmul.f32.gmra.mxu0 %v771
        %v793 = vpop.f32.mrf.mxu0
        %v794 = vadd.f32 %v765, %v793
        %795 = vdwg.mxu0
        %796 = vst.msk [vmem:[%s429] sm:$0xff] %vm552, %v791
        %797 = vst.msk [vmem:[%s429 + $0x8] sm:$0xff] %vm552, %v794
        %s798 = sand.u32 %s313, 1
        %s799 = scalar_lea.sflag [#allocation3], %s798
        %s800 = sand.u32 %s313, 1
        %s801 = smul.addr %s800, 16
        %s802 = scalar_lea.vmem [#allocation2], %s801
        // Predicated region
        $region73: #{tpu_custom_call.1} parent=71 // pred_check
          %p803 = pneg %p323
        $region74: #{tpu_custom_call.1} parent=71 // pred_check_branch
          %805 = sbr.rel (%p803) target = $region76
        $region75: #{tpu_custom_call.1} parent=71 // pred_region
          %807 = vsyncadd %s799, 0
          %s808 = smul.addr %s27, 2
          %s809 = smul.addr %s808, 8
          %s810 = scalar_lea.hbm %s13, %s809
          %s811 = sshll.u32 %s802, 4
          %s812 = int_to_ptr.vmem [resolvable:$true] %s811
          %s813 = sshll.u32 %s810, 4
          %s814 = int_to_ptr.hbm [resolvable:$true] %s813
          %819 = dma.vmem_to_hbm [thread:$0]  %s812, 256, %s814, %s799, 128, 128, 8
        $region76: #{tpu_custom_call.1} parent=71 // pred_fallthru
          _
      $region72: #{tpu_custom_call.1} parent=5 // pred_fallthru
        _
      %p820 = scmp.le.s32.totalorder 2, %s22
      // Predicated region
      $region77: #{tpu_custom_call.1} parent=5 // pred_check
        %p821 = pneg %p820
      $region78: #{tpu_custom_call.1} parent=5 // pred_check_branch
        %823 = sbr.rel (%p821) target = $region80
      $region79: #{tpu_custom_call.1} parent=5 // pred_region
        %s824 = ssub.s32 %s22, 2
        // Predicated region
        $region81: #{tpu_custom_call.1} parent=79 // pred_check
          %p825 = pneg %p329
        $region82: #{tpu_custom_call.1} parent=79 // pred_check_branch
          %827 = sbr.rel (%p825) target = $region84
        $region83: #{tpu_custom_call.1} parent=79 // pred_region
          %s828 = sand.u32 %s314, 1
          %s829 = scalar_lea.sflag [#allocation3], %s828
          %s830 = sand.u32 %s314, 1
          %s831 = smul.addr %s830, 16
          %s832 = scalar_lea.vmem [#allocation2], %s831
          %834 = dma.done %s829, 256
        $region84: #{tpu_custom_call.1} parent=79 // pred_fallthru
          _
      $region80: #{tpu_custom_call.1} parent=5 // pred_fallthru
        _
    $region6: #{tpu_custom_call.1} parent=1 // loop_footer
      %s26 = sadd.s32 1, %s22
    $region7: #{tpu_custom_call.1} parent=1 // loop_footer_branch
      %21 = sbr.rel target = $region3
    $region8: #{tpu_custom_call.1} parent=1 // loop_exit
      _
    %835 = vsyncpa [#allocation3], 1
    %s836 = scalar_lea.sflag [#allocation3], 1
    %837 = vsyncpa %s836, 1

</llo_original>
